<compile_context>
chip_gen: v7x
topology: tpu7x:2x2x1
jax: 0.10.0
libtpu: 0.0.40
codegen_flags: <defaults>
</compile_context>

<pallas_src>
import functools

import jax
import jax.numpy as jnp
from jax.experimental import pallas as pl
from jax.experimental.pallas import tpu as pltpu


def _round_up(x, m):
    return ((x + m - 1) // m) * m


def _finaltanh_kernel(z_ref, w_in_ref, b_in_ref, w_h_ref, b_h_ref,
                      w_out_ref, b_out_ref, o_ref, *, n_hidden):
    # linear_in + relu  (bf16 operands, f32 accumulation on the MXU)
    h = jnp.dot(z_ref[...], w_in_ref[...],
                preferred_element_type=jnp.float32)
    h = jnp.maximum(h + b_in_ref[...], 0.0)

    # hidden linears + relu (static unrolled loop over stacked weights)
    for l in range(n_hidden):
        h = jnp.dot(h.astype(jnp.bfloat16), w_h_ref[l],
                    preferred_element_type=jnp.float32)
        h = jnp.maximum(h + b_h_ref[pl.ds(l, 1), :], 0.0)

    # linear_out + tanh
    out = jnp.dot(h.astype(jnp.bfloat16), w_out_ref[...],
                  preferred_element_type=jnp.float32)
    out = jnp.tanh(out + b_out_ref[...])
    o_ref[...] = out.astype(o_ref.dtype)


def finaltanh_forward(z, params, input_channels, hidden_channels,
                      *, block_batch=256):
    """z: (batch, hidden_channels) f32 -> (batch, hidden_channels, input_channels) f32."""
    w_in, b_in, w_h, b_h, w_out, b_out = params
    batch = z.shape[0]
    hh = w_in.shape[1]
    out_feat = hidden_channels * input_channels
    n_hidden = w_h.shape[0]

    # bf16 matmul operands (f32 accumulation happens in-kernel); biases stay f32.
    z_bf = z.astype(jnp.bfloat16)
    w_in_bf = w_in.astype(jnp.bfloat16)
    w_out_bf = w_out.astype(jnp.bfloat16)
    if n_hidden == 0:
        # Never indexed (static loop count 0); avoids zero-sized pallas operands.
        w_h_bf = jnp.zeros((1, hh, hh), jnp.bfloat16)
        b_h_f32 = jnp.zeros((1, hh), jnp.float32)
    else:
        w_h_bf = w_h.astype(jnp.bfloat16)
        b_h_f32 = b_h.astype(jnp.float32)

    # Batch tile: multiple of 8 (sublane), capped; pad batch to a tile multiple.
    tb = min(block_batch, _round_up(batch, 8))
    padded = _round_up(batch, tb)
    if padded != batch:
        z_bf = jnp.pad(z_bf, ((0, padded - batch), (0, 0)))
    grid = (padded // tb,)

    flops = 2 * padded * (hidden_channels * hh + n_hidden * hh * hh + hh * out_feat)
    transcendentals = padded * out_feat
    bytes_accessed = (2 * (z_bf.size + w_in_bf.size + w_h_bf.size + w_out_bf.size)
                      + 4 * (b_in.size + b_h_f32.size + b_out.size
                             + padded * out_feat))

    kernel = functools.partial(_finaltanh_kernel, n_hidden=n_hidden)

    out_flat = pl.pallas_call(
        kernel,
        out_shape=jax.ShapeDtypeStruct((padded, out_feat), jnp.float32),
        grid=grid,
        in_specs=[
            pl.BlockSpec((tb, hidden_channels), lambda i: (i, 0)),        # z (tiled)
            pl.BlockSpec((hidden_channels, hh), lambda i: (0, 0)),        # w_in (resident)
            pl.BlockSpec((1, hh), lambda i: (0, 0)),                      # b_in
            pl.BlockSpec((w_h_bf.shape[0], hh, hh), lambda i: (0, 0, 0)),  # w_h
            pl.BlockSpec((w_h_bf.shape[0], hh), lambda i: (0, 0)),        # b_h
            pl.BlockSpec((hh, out_feat), lambda i: (0, 0)),               # w_out
            pl.BlockSpec((1, out_feat), lambda i: (0, 0)),                # b_out
        ],
        out_specs=pl.BlockSpec((tb, out_feat), lambda i: (i, 0)),
        compiler_params=pltpu.CompilerParams(
            dimension_semantics=("parallel",)),
        cost_estimate=pl.CostEstimate(flops=flops,
                                      transcendentals=transcendentals,
                                      bytes_accessed=bytes_accessed),
    )(z_bf, w_in_bf, b_in, w_h_bf, b_h_f32, w_out_bf, b_out)

    out_flat = out_flat[:batch]
    # row-major split of last dim, identical to torch .view(..., hidden, input)
    return out_flat.reshape(batch, hidden_channels, input_channels)


def init_params(key, input_channels, hidden_channels, hidden_hidden_channels,
                num_hidden_layers):
    """Deterministic synthetic parameters. Weights stored as (in, out)."""
    ks = jax.random.split(key, 6)
    n_hidden = max(num_hidden_layers - 1, 0)
    w_in = jax.random.normal(ks[0], (hidden_channels, hidden_hidden_channels),
                             jnp.float32) * 0.1
    b_in = jax.random.normal(ks[1], (1, hidden_hidden_channels), jnp.float32) * 0.1
    if n_hidden > 0:
        w_h = jax.random.normal(ks[2], (n_hidden, hidden_hidden_channels,
                                        hidden_hidden_channels), jnp.float32) * 0.1
        b_h = jax.random.normal(ks[3], (n_hidden, hidden_hidden_channels),
                                jnp.float32) * 0.1
    else:
        w_h = jnp.zeros((0, hidden_hidden_channels, hidden_hidden_channels),
                        jnp.float32)
        b_h = jnp.zeros((0, hidden_hidden_channels), jnp.float32)
    w_out = jax.random.normal(ks[4], (hidden_hidden_channels,
                                      input_channels * hidden_channels),
                              jnp.float32) * 0.1
    b_out = jax.random.normal(ks[5], (1, input_channels * hidden_channels),
                              jnp.float32) * 0.1
    return (w_in, b_in, w_h, b_h, w_out, b_out)


def finaltanh_reference(z, params, input_channels, hidden_channels):
    """Pure-JAX f32 reference mirroring the PyTorch forward."""
    w_in, b_in, w_h, b_h, w_out, b_out = params
    h = jnp.maximum(z @ w_in + b_in, 0.0)
    for l in range(w_h.shape[0]):
        h = jnp.maximum(h @ w_h[l] + b_h[l:l + 1], 0.0)
    out = jnp.tanh(h @ w_out + b_out)
    return out.reshape(z.shape[0], hidden_channels, input_channels)


if __name__ == "__main__":
    # Small shapes consistent with the module.
    input_channels = 4
    hidden_channels = 32
    hidden_hidden_channels = 32
    num_hidden_layers = 2
    batch = 8

    key = jax.random.PRNGKey(0)
    k_z, k_p = jax.random.split(key)
    z = jax.random.normal(k_z, (batch, hidden_channels), jnp.float32)
    params = init_params(k_p, input_channels, hidden_channels,
                         hidden_hidden_channels, num_hidden_layers)

    out = finaltanh_forward(z, params, input_channels, hidden_channels)
    out = jax.block_until_ready(out)

    ref = finaltanh_reference(z, params, input_channels, hidden_channels)
    assert out.shape == (batch, hidden_channels, input_channels)
    # bf16 matmul operands with f32 accumulation -> looser tolerance than pure f32.
    assert jnp.allclose(out, ref, atol=2e-2, rtol=2e-2), (
        float(jnp.max(jnp.abs(out - ref))))
    print("KERNEL_OK")
</pallas_src>

<mosaic_0001>
module attributes {stable_mosaic.version = 11 : i64} {
  func.func @_finaltanh_kernel(%arg0: i32, %arg1: memref<8x32xbf16, #tpu.memory_space<vmem>>, %arg2: memref<32x32xbf16, #tpu.memory_space<vmem>>, %arg3: memref<1x32xf32, #tpu.memory_space<vmem>>, %arg4: memref<1x32x32xbf16, #tpu.memory_space<vmem>>, %arg5: memref<1x32xf32, #tpu.memory_space<vmem>>, %arg6: memref<32x128xbf16, #tpu.memory_space<vmem>>, %arg7: memref<1x128xf32, #tpu.memory_space<vmem>>, %arg8: memref<8x128xf32, #tpu.memory_space<vmem>>) attributes {dimension_semantics = [#tpu.dimension_semantics<parallel>], iteration_bounds = array<i64: 1>, scalar_prefetch = 0 : i64, scratch_operands = 0 : i64, tpu.core_type = #tpu.core_type<tc>, window_params = [{transform_indices = @transform_0, window_bounds = array<i64: 8, 32>}, {pipeline_mode = #tpu.pipeline_mode<synchronous>, transform_indices = @transform_1, window_bounds = array<i64: 32, 32>}, {pipeline_mode = #tpu.pipeline_mode<synchronous>, transform_indices = @transform_2, window_bounds = array<i64: 1, 32>}, {pipeline_mode = #tpu.pipeline_mode<synchronous>, transform_indices = @transform_3, window_bounds = array<i64: 1, 32, 32>}, {pipeline_mode = #tpu.pipeline_mode<synchronous>, transform_indices = @transform_4, window_bounds = array<i64: 1, 32>}, {pipeline_mode = #tpu.pipeline_mode<synchronous>, transform_indices = @transform_5, window_bounds = array<i64: 32, 128>}, {pipeline_mode = #tpu.pipeline_mode<synchronous>, transform_indices = @transform_6, window_bounds = array<i64: 1, 128>}, {transform_indices = @transform_7, window_bounds = array<i64: 8, 128>}]} {
    %c0 = arith.constant 0 : index
    %c0_0 = arith.constant 0 : index
    %0 = vector.load %arg1[%c0, %c0_0] : memref<8x32xbf16, #tpu.memory_space<vmem>>, vector<8x32xbf16>
    %c0_1 = arith.constant 0 : index
    %c0_2 = arith.constant 0 : index
    %1 = vector.load %arg2[%c0_1, %c0_2] : memref<32x32xbf16, #tpu.memory_space<vmem>>, vector<32x32xbf16>
    %cst = arith.constant dense<0.000000e+00> : vector<8x32xf32>
    %2 = tpu.matmul %0, %1, %cst {dimension_numbers = #tpu.dot_dimension_numbers<[1], [0], [0], [1], [0, 0, 1, 1], [], []>} : vector<8x32xbf16>, vector<32x32xbf16>, vector<8x32xf32> -> vector<8x32xf32>
    %c0_3 = arith.constant 0 : index
    %c0_4 = arith.constant 0 : index
    %3 = vector.load %arg3[%c0_3, %c0_4] : memref<1x32xf32, #tpu.memory_space<vmem>>, vector<1x32xf32>
    %4 = vector.broadcast %3 : vector<1x32xf32> to vector<8x32xf32>
    %5 = arith.addf %2, %4 : vector<8x32xf32>
    %cst_5 = arith.constant 0.000000e+00 : f32
    %6 = vector.broadcast %cst_5 : f32 to vector<8x32xf32>
    %7 = arith.maximumf %5, %6 : vector<8x32xf32>
    %8 = arith.truncf %7 : vector<8x32xf32> to vector<8x32xbf16>
    %c0_6 = arith.constant 0 : index
    %c0_7 = arith.constant 0 : index
    %c0_8 = arith.constant 0 : index
    %9 = vector.load %arg4[%c0_6, %c0_7, %c0_8] : memref<1x32x32xbf16, #tpu.memory_space<vmem>>, vector<1x32x32xbf16>
    %10 = vector.shape_cast %9 : vector<1x32x32xbf16> to vector<32x32xbf16>
    %cst_9 = arith.constant dense<0.000000e+00> : vector<8x32xf32>
    %11 = tpu.matmul %8, %10, %cst_9 {dimension_numbers = #tpu.dot_dimension_numbers<[1], [0], [0], [1], [0, 0, 1, 1], [], []>} : vector<8x32xbf16>, vector<32x32xbf16>, vector<8x32xf32> -> vector<8x32xf32>
    %c0_10 = arith.constant 0 : index
    %c0_11 = arith.constant 0 : index
    %12 = vector.load %arg5[%c0_10, %c0_11] : memref<1x32xf32, #tpu.memory_space<vmem>>, vector<1x32xf32>
    %13 = vector.broadcast %12 : vector<1x32xf32> to vector<8x32xf32>
    %14 = arith.addf %11, %13 : vector<8x32xf32>
    %cst_12 = arith.constant 0.000000e+00 : f32
    %15 = vector.broadcast %cst_12 : f32 to vector<8x32xf32>
    %16 = arith.maximumf %14, %15 : vector<8x32xf32>
    %17 = arith.truncf %16 : vector<8x32xf32> to vector<8x32xbf16>
    %c0_13 = arith.constant 0 : index
    %c0_14 = arith.constant 0 : index
    %18 = vector.load %arg6[%c0_13, %c0_14] : memref<32x128xbf16, #tpu.memory_space<vmem>>, vector<32x128xbf16>
    %cst_15 = arith.constant dense<0.000000e+00> : vector<8x128xf32>
    %19 = tpu.matmul %17, %18, %cst_15 {dimension_numbers = #tpu.dot_dimension_numbers<[1], [0], [0], [1], [0, 0, 1, 1], [], []>} : vector<8x32xbf16>, vector<32x128xbf16>, vector<8x128xf32> -> vector<8x128xf32>
    %c0_16 = arith.constant 0 : index
    %c0_17 = arith.constant 0 : index
    %20 = vector.load %arg7[%c0_16, %c0_17] : memref<1x128xf32, #tpu.memory_space<vmem>>, vector<1x128xf32>
    %21 = vector.broadcast %20 : vector<1x128xf32> to vector<8x128xf32>
    %22 = arith.addf %19, %21 : vector<8x128xf32>
    %23 = math.tanh %22 : vector<8x128xf32>
    %c0_18 = arith.constant 0 : index
    %c0_19 = arith.constant 0 : index
    %24 = vector.load %arg8[%c0_18, %c0_19] : memref<8x128xf32, #tpu.memory_space<vmem>>, vector<8x128xf32>
    tpu.vector_store %arg8[%c0_18, %c0_19], %23 {strides = array<i32>} : memref<8x128xf32, #tpu.memory_space<vmem>>, vector<8x128xf32>,
    return
  }
  func.func @transform_0(%arg0: i32) -> (i32, i32) {
    %c0_i32 = arith.constant 0 : i32
    %c0_i32_0 = arith.constant 0 : i32
    return %arg0, %c0_i32 : i32, i32
  }
  func.func @transform_1(%arg0: i32) -> (i32, i32) {
    %c0_i32 = arith.constant 0 : i32
    %c0_i32_0 = arith.constant 0 : i32
    %c0_i32_1 = arith.constant 0 : i32
    return %c0_i32, %c0_i32_0 : i32, i32
  }
  func.func @transform_2(%arg0: i32) -> (i32, i32) {
    %c0_i32 = arith.constant 0 : i32
    %c0_i32_0 = arith.constant 0 : i32
    %c0_i32_1 = arith.constant 0 : i32
    return %c0_i32, %c0_i32_0 : i32, i32
  }
  func.func @transform_3(%arg0: i32) -> (i32, i32, i32) {
    %c0_i32 = arith.constant 0 : i32
    %c0_i32_0 = arith.constant 0 : i32
    %c0_i32_1 = arith.constant 0 : i32
    %c0_i32_2 = arith.constant 0 : i32
    return %c0_i32, %c0_i32_0, %c0_i32_1 : i32, i32, i32
  }
  func.func @transform_4(%arg0: i32) -> (i32, i32) {
    %c0_i32 = arith.constant 0 : i32
    %c0_i32_0 = arith.constant 0 : i32
    %c0_i32_1 = arith.constant 0 : i32
    return %c0_i32, %c0_i32_0 : i32, i32
  }
  func.func @transform_5(%arg0: i32) -> (i32, i32) {
    %c0_i32 = arith.constant 0 : i32
    %c0_i32_0 = arith.constant 0 : i32
    %c0_i32_1 = arith.constant 0 : i32
    return %c0_i32, %c0_i32_0 : i32, i32
  }
  func.func @transform_6(%arg0: i32) -> (i32, i32) {
    %c0_i32 = arith.constant 0 : i32
    %c0_i32_0 = arith.constant 0 : i32
    %c0_i32_1 = arith.constant 0 : i32
    return %c0_i32, %c0_i32_0 : i32, i32
  }
  func.func @transform_7(%arg0: i32) -> (i32, i32) {
    %c0_i32 = arith.constant 0 : i32
    %c0_i32_0 = arith.constant 0 : i32
    return %arg0, %c0_i32 : i32, i32
  }
}

</mosaic_0001>

<llo_original>
// kernel: tpu_custom_call.1
$region0: #{tpu_custom_call.1}
  #allocation0 [shape = 'u32[]', space=smem, size = 0x4, offset = 0x4, fixed_abs, tag = 'smem constant byte address 0x4 - core index']
  #allocation1 [shape = 'u32[144,128]{1,0:T(1,128)}', space=vmem, size = 0x12000, scoped, tag = 'internal scratch']
  %s0 = inlined_call_operand.hbm [shape: bf16[8,32], index: 0, kind: input, shape index: {}]
  %s1 = inlined_call_operand.hbm [shape: bf16[32,32], index: 1, kind: input, shape index: {}]
  %s2 = inlined_call_operand.vmem [shape: f32[1,32], index: 2, kind: input, shape index: {}]
  %s3 = inlined_call_operand.hbm [shape: bf16[1,32,32], index: 3, kind: input, shape index: {}]
  %s4 = inlined_call_operand.vmem [shape: f32[1,32], index: 4, kind: input, shape index: {}]
  %s5 = inlined_call_operand.vmem [shape: bf16[32,128], index: 5, kind: input, shape index: {}]
  %s6 = inlined_call_operand.vmem [shape: f32[1,128], index: 6, kind: input, shape index: {}]
  %s7 = inlined_call_operand.hbm [shape: f32[8,128], index: 7, kind: output, shape index: {}]
  %s8 = sld [smem:[#allocation0]]
  $region50: #{tpu_custom_call.1} parent=0
    _
  %s10 = ssub.s32 1, %s8
  %s11 = scalar_select 0, %s10, %s8
  $region1: #{tpu_custom_call.1} parent=0
    #allocation2 [shape = 'u8[2048]{0}', space=vmem, size = 0x800, scoped, tag = 'input window, operand 0, single buffered']
    #allocation3 [shape = 's32[1]{0}', space=sflag, size = 0x4, scoped, tag = 'scoped memory for tpu_custom_call.1']
    #allocation4 [shape = 's32[1]{0}', space=sflag, size = 0x4, scoped, tag = 'scoped memory for tpu_custom_call.1']
    #allocation5 [shape = 'u8[8192]{0}', space=vmem, size = 0x2000, scoped, tag = 'input window, operand 1, single buffered']
    #allocation6 [shape = 's32[1]{0}', space=sflag, size = 0x4, scoped, tag = 'scoped memory for tpu_custom_call.1']
    #allocation7 [shape = 'u8[8192]{0}', space=vmem, size = 0x2000, scoped, tag = 'input window, operand 3, single buffered']
    #allocation8 [shape = 'u8[4096]{0}', space=vmem, size = 0x1000, scoped, tag = 'output window, operand 0, single buffered']
    %12 = vsyncpa [#allocation3], 0
    %13 = vsyncpa [#allocation6], 0
    %14 = vsyncpa [#allocation4], 0
    // Predicated region
    $region2: #{tpu_custom_call.1} parent=1 // pred_check
      _
    $region3: #{tpu_custom_call.1} parent=1 // pred_check_branch
      %16 = sbr.rel (0) target = $region5
    $region4: #{tpu_custom_call.1} parent=1 // pred_region
      %s18 = ssub.s32 64, 64
      %19 = vsyncadd [#allocation3], %s18
      %s21 = sshll.u32 [#allocation2], 4
      %s22 = int_to_ptr.vmem [resolvable:$true] %s21
      %24 = dma.hbm_to_vmem [thread:$0]  %s0, 64, %s22, [#allocation3]
    $region5: #{tpu_custom_call.1} parent=1 // pred_fallthru
      _
    // Predicated region
    $region6: #{tpu_custom_call.1} parent=1 // pred_check
      _
    $region7: #{tpu_custom_call.1} parent=1 // pred_check_branch
      %26 = sbr.rel (0) target = $region9
    $region8: #{tpu_custom_call.1} parent=1 // pred_region
      %s28 = ssub.s32 256, 256
      %29 = vsyncadd [#allocation6], %s28
      %s30 = sshll.u32 [#allocation5], 4
      %s31 = int_to_ptr.vmem [resolvable:$true] %s30
      %36 = dma.hbm_to_vmem [thread:$0]  %s1, 256, %s31, [#allocation6], 64, 64, 4
    $region9: #{tpu_custom_call.1} parent=1 // pred_fallthru
      _
    // Predicated region
    $region10: #{tpu_custom_call.1} parent=1 // pred_check
      _
    $region11: #{tpu_custom_call.1} parent=1 // pred_check_branch
      %38 = sbr.rel (0) target = $region13
    $region12: #{tpu_custom_call.1} parent=1 // pred_region
      _
    $region13: #{tpu_custom_call.1} parent=1 // pred_fallthru
      _
    // Predicated region
    $region14: #{tpu_custom_call.1} parent=1 // pred_check
      _
    $region15: #{tpu_custom_call.1} parent=1 // pred_check_branch
      %40 = sbr.rel (0) target = $region17
    $region16: #{tpu_custom_call.1} parent=1 // pred_region
      %s42 = ssub.s32 256, 256
      %43 = vsyncadd [#allocation6], %s42
      %s44 = sshll.u32 [#allocation7], 4
      %s45 = int_to_ptr.vmem [resolvable:$true] %s44
      %50 = dma.hbm_to_vmem [thread:$0]  %s3, 256, %s45, [#allocation6], 64, 64, 4
    $region17: #{tpu_custom_call.1} parent=1 // pred_fallthru
      _
    // Predicated region
    $region18: #{tpu_custom_call.1} parent=1 // pred_check
      _
    $region19: #{tpu_custom_call.1} parent=1 // pred_check_branch
      %52 = sbr.rel (0) target = $region21
    $region20: #{tpu_custom_call.1} parent=1 // pred_region
      _
    $region21: #{tpu_custom_call.1} parent=1 // pred_fallthru
      _
    // Predicated region
    $region22: #{tpu_custom_call.1} parent=1 // pred_check
      _
    $region23: #{tpu_custom_call.1} parent=1 // pred_check_branch
      %54 = sbr.rel (0) target = $region25
    $region24: #{tpu_custom_call.1} parent=1 // pred_region
      _
    $region25: #{tpu_custom_call.1} parent=1 // pred_fallthru
      _
    // Predicated region
    $region26: #{tpu_custom_call.1} parent=1 // pred_check
      _
    $region27: #{tpu_custom_call.1} parent=1 // pred_check_branch
      %56 = sbr.rel (0) target = $region29
    $region28: #{tpu_custom_call.1} parent=1 // pred_region
      _
    $region29: #{tpu_custom_call.1} parent=1 // pred_fallthru
      _
    // Predicated region
    $region30: #{tpu_custom_call.1} parent=1 // pred_check
      _
    $region31: #{tpu_custom_call.1} parent=1 // pred_check_branch
      %58 = sbr.rel (0) target = $region33
    $region32: #{tpu_custom_call.1} parent=1 // pred_region
      %59 = dma.done [#allocation3], 64
    $region33: #{tpu_custom_call.1} parent=1 // pred_fallthru
      _
    // Predicated region
    $region34: #{tpu_custom_call.1} parent=1 // pred_check
      _
    $region35: #{tpu_custom_call.1} parent=1 // pred_check_branch
      %61 = sbr.rel (0) target = $region37
    $region36: #{tpu_custom_call.1} parent=1 // pred_region
      %62 = dma.done [#allocation6], 256
    $region37: #{tpu_custom_call.1} parent=1 // pred_fallthru
      _
    // Predicated region
    $region38: #{tpu_custom_call.1} parent=1 // pred_check
      _
    $region39: #{tpu_custom_call.1} parent=1 // pred_check_branch
      %64 = sbr.rel (0) target = $region41
    $region40: #{tpu_custom_call.1} parent=1 // pred_region
      %65 = dma.done [#allocation6], 256
    $region41: #{tpu_custom_call.1} parent=1 // pred_fallthru
      _
    %v67 = vld [vmem:[#allocation2] sm:$0xf]
    %v68 = vld [vmem:[#allocation5] sm:$0xf]
    %v69 = vld [vmem:[#allocation5 + $0x4] sm:$0xf]
    %v70 = vld [vmem:[#allocation5 + $0x8] sm:$0xf]
    %v71 = vld [vmem:[#allocation5 + $0xc] sm:$0xf]
    %v72 = vld [vmem:[%s2] sm:$0x1]
    %v74 = vlaneseq
    %v75 = vshrl.u32 %v74, 7
    %v76 = vsub.s32 0, %v75
    %v77 = vrot.slane %v72, %v76
    %v83 = vunpack.c.l.b16 %v68
    %v84 = vunpack.c.l.b16 %v69
    %v85 = vunpack.c.l.b16 %v70
    %v86 = vunpack.c.l.b16 %v71
    %v87 = vpack.c.b16 %v84, %v83
    %v88 = vpack.c.b16 %v86, %v85
    %vm91 = vcmask 261120
    %v93 = vsel %vm91, %v67, 0
    %95 = vmatprep.subr.bf16.mxu0 0
    %96 = vmatpush1.bf16.msra.mxu0 %v87
    %97 = vmatprep.subr.bf16.mxu0 0
    %98 = vmatpush1.bf16.msra.mxu0 %v88
    %99 = vmatprep.subr.bf16.mxu0 0
    %100 = vmatpush1.bf16.msra.mxu0 0
    %101 = vmatprep.subr.bf16.mxu0 0
    %102 = vmatpush1.bf16.msra.mxu0 0
    %103 = vmatprep.subr.bf16.mxu0 0
    %104 = vmatpush1.bf16.msra.mxu0 0
    %105 = vmatprep.subr.bf16.mxu0 0
    %106 = vmatpush1.bf16.msra.mxu0 0
    %107 = vmatprep.subr.bf16.mxu0 0
    %108 = vmatpush1.bf16.msra.mxu0 0
    %109 = vmatprep.subr.bf16.mxu0 0
    %110 = vmatpush1.bf16.msra.mxu0 0
    %111 = vmatprep.subr.bf16.mxu0 0
    %112 = vmatpush1.bf16.msra.mxu0 0
    %113 = vmatprep.subr.bf16.mxu0 0
    %114 = vmatpush1.bf16.msra.mxu0 0
    %115 = vmatprep.subr.bf16.mxu0 0
    %116 = vmatpush1.bf16.msra.mxu0 0
    %117 = vmatprep.subr.bf16.mxu0 0
    %118 = vmatpush1.bf16.msra.mxu0 0
    %119 = vmatprep.subr.bf16.mxu0 0
    %120 = vmatpush1.bf16.msra.mxu0 0
    %121 = vmatprep.subr.bf16.mxu0 0
    %122 = vmatpush1.bf16.msra.mxu0 0
    %123 = vmatprep.subr.bf16.mxu0 0
    %124 = vmatpush1.bf16.msra.mxu0 0
    %125 = vmatprep.subr.bf16.mxu0 0
    %126 = vmatpush1.bf16.msra.mxu0 0
    %127 = vmatprep.mubr.bf16.mxu0 0
    %128 = vmatmul.mubr.bf16.gmra.mrb[0].mxu0 %v93
    %v129 = vpop.f32.mrb[0].mxu0
    %v130 = vadd.f32 %v77, %v129
    %v131 = vpop.f32.mrb[0].mxu0
    %v132 = vpop.f32.mrb[0].mxu0
    %v133 = vpop.f32.mrb[0].mxu0
    %134 = vdwg.mxu0
    %v135 = vmax.f32 %v130, 0.0
    %v136 = vpack.c.bf16 %v135, %v135
    %v137 = vld [vmem:[#allocation7] sm:$0xf]
    %v138 = vld [vmem:[#allocation7 + $0x4] sm:$0xf]
    %v139 = vld [vmem:[#allocation7 + $0x8] sm:$0xf]
    %v140 = vld [vmem:[#allocation7 + $0xc] sm:$0xf]
    %v141 = vld [vmem:[%s4] sm:$0x1]
    %v143 = vlaneseq
    %v144 = vshrl.u32 %v143, 7
    %v145 = vsub.s32 0, %v144
    %v146 = vrot.slane %v141, %v145
    %v152 = vunpack.c.l.b16 %v137
    %v153 = vunpack.c.l.b16 %v138
    %v154 = vunpack.c.l.b16 %v139
    %v155 = vunpack.c.l.b16 %v140
    %v156 = vpack.c.b16 %v153, %v152
    %v157 = vpack.c.b16 %v155, %v154
    %v161 = vsel %vm91, %v136, 0
    %163 = vmatprep.subr.bf16.mxu0 0
    %164 = vmatpush1.bf16.msra.mxu0 %v156
    %165 = vmatprep.subr.bf16.mxu0 0
    %166 = vmatpush1.bf16.msra.mxu0 %v157
    %167 = vmatprep.subr.bf16.mxu0 0
    %168 = vmatpush1.bf16.msra.mxu0 0
    %169 = vmatprep.subr.bf16.mxu0 0
    %170 = vmatpush1.bf16.msra.mxu0 0
    %171 = vmatprep.subr.bf16.mxu0 0
    %172 = vmatpush1.bf16.msra.mxu0 0
    %173 = vmatprep.subr.bf16.mxu0 0
    %174 = vmatpush1.bf16.msra.mxu0 0
    %175 = vmatprep.subr.bf16.mxu0 0
    %176 = vmatpush1.bf16.msra.mxu0 0
    %177 = vmatprep.subr.bf16.mxu0 0
    %178 = vmatpush1.bf16.msra.mxu0 0
    %179 = vmatprep.subr.bf16.mxu0 0
    %180 = vmatpush1.bf16.msra.mxu0 0
    %181 = vmatprep.subr.bf16.mxu0 0
    %182 = vmatpush1.bf16.msra.mxu0 0
    %183 = vmatprep.subr.bf16.mxu0 0
    %184 = vmatpush1.bf16.msra.mxu0 0
    %185 = vmatprep.subr.bf16.mxu0 0
    %186 = vmatpush1.bf16.msra.mxu0 0
    %187 = vmatprep.subr.bf16.mxu0 0
    %188 = vmatpush1.bf16.msra.mxu0 0
    %189 = vmatprep.subr.bf16.mxu0 0
    %190 = vmatpush1.bf16.msra.mxu0 0
    %191 = vmatprep.subr.bf16.mxu0 0
    %192 = vmatpush1.bf16.msra.mxu0 0
    %193 = vmatprep.subr.bf16.mxu0 0
    %194 = vmatpush1.bf16.msra.mxu0 0
    %195 = vmatprep.mubr.bf16.mxu0 0
    %196 = vmatmul.mubr.bf16.gmra.mrb[0].mxu0 %v161
    %v197 = vpop.f32.mrb[0].mxu0
    %v198 = vadd.f32 %v146, %v197
    %v199 = vpop.f32.mrb[0].mxu0
    %v200 = vpop.f32.mrb[0].mxu0
    %v201 = vpop.f32.mrb[0].mxu0
    %202 = vdwg.mxu0
    %v203 = vmax.f32 %v198, 0.0
    %v204 = vpack.c.bf16 %v203, %v203
    %v205 = vld [vmem:[%s5] sm:$0xf]
    %v206 = vld [vmem:[%s5 + $0x4] sm:$0xf]
    %v207 = vld [vmem:[%s5 + $0x8] sm:$0xf]
    %v208 = vld [vmem:[%s5 + $0xc] sm:$0xf]
    %v209 = vld [vmem:[%s6] sm:$0x1]
    %v211 = vlaneseq
    %v212 = vshrl.u32 %v211, 7
    %v213 = vsub.s32 0, %v212
    %v214 = vrot.slane %v209, %v213
    %v220 = vunpack.c.l.b16 %v205
    %v221 = vunpack.c.l.b16 %v206
    %v222 = vunpack.c.l.b16 %v207
    %v223 = vunpack.c.l.b16 %v208
    %v224 = vpack.c.b16 %v221, %v220
    %v225 = vpack.c.b16 %v223, %v222
    %v229 = vsel %vm91, %v204, 0
    %231 = vmatprep.subr.bf16.mxu0 0
    %232 = vmatpush1.bf16.msra.mxu0 %v224
    %233 = vmatprep.subr.bf16.mxu0 0
    %234 = vmatpush1.bf16.msra.mxu0 %v225
    %235 = vmatprep.subr.bf16.mxu0 0
    %236 = vmatpush1.bf16.msra.mxu0 0
    %237 = vmatprep.subr.bf16.mxu0 0
    %238 = vmatpush1.bf16.msra.mxu0 0
    %239 = vmatprep.subr.bf16.mxu0 0
    %240 = vmatpush1.bf16.msra.mxu0 0
    %241 = vmatprep.subr.bf16.mxu0 0
    %242 = vmatpush1.bf16.msra.mxu0 0
    %243 = vmatprep.subr.bf16.mxu0 0
    %244 = vmatpush1.bf16.msra.mxu0 0
    %245 = vmatprep.subr.bf16.mxu0 0
    %246 = vmatpush1.bf16.msra.mxu0 0
    %247 = vmatprep.subr.bf16.mxu0 0
    %248 = vmatpush1.bf16.msra.mxu0 0
    %249 = vmatprep.subr.bf16.mxu0 0
    %250 = vmatpush1.bf16.msra.mxu0 0
    %251 = vmatprep.subr.bf16.mxu0 0
    %252 = vmatpush1.bf16.msra.mxu0 0
    %253 = vmatprep.subr.bf16.mxu0 0
    %254 = vmatpush1.bf16.msra.mxu0 0
    %255 = vmatprep.subr.bf16.mxu0 0
    %256 = vmatpush1.bf16.msra.mxu0 0
    %257 = vmatprep.subr.bf16.mxu0 0
    %258 = vmatpush1.bf16.msra.mxu0 0
    %259 = vmatprep.subr.bf16.mxu0 0
    %260 = vmatpush1.bf16.msra.mxu0 0
    %261 = vmatprep.subr.bf16.mxu0 0
    %262 = vmatpush1.bf16.msra.mxu0 0
    %263 = vmatprep.mubr.bf16.mxu0 0
    %264 = vmatmul.mubr.bf16.gmra.mrb[0].mxu0 %v229
    %v265 = vpop.f32.mrb[0].mxu0
    %v266 = vadd.f32 %v214, %v265
    %v267 = vpop.f32.mrb[0].mxu0
    %v268 = vpop.f32.mrb[0].mxu0
    %v269 = vpop.f32.mrb[0].mxu0
    %270 = vdwg.mxu0
    %v271 = vtanh.pop %v266
    %272 = vst [vmem:[#allocation8] sm:$0xff] %v271
    // Predicated region
    $region42: #{tpu_custom_call.1} parent=1 // pred_check
      _
    $region43: #{tpu_custom_call.1} parent=1 // pred_check_branch
      %274 = sbr.rel (0) target = $region45
    $region44: #{tpu_custom_call.1} parent=1 // pred_region
      %s276 = ssub.s32 128, 128
      %277 = vsyncadd [#allocation4], %s276
      %s279 = sshll.u32 [#allocation8], 4
      %s280 = int_to_ptr.vmem [resolvable:$true] %s279
      %282 = dma.vmem_to_hbm [thread:$0]  %s280, 128, %s7, [#allocation4]
    $region45: #{tpu_custom_call.1} parent=1 // pred_fallthru
      _
    // Predicated region
    $region46: #{tpu_custom_call.1} parent=1 // pred_check
      _
    $region47: #{tpu_custom_call.1} parent=1 // pred_check_branch
      %284 = sbr.rel (0) target = $region49
    $region48: #{tpu_custom_call.1} parent=1 // pred_region
      %285 = dma.done [#allocation4], 128
    $region49: #{tpu_custom_call.1} parent=1 // pred_fallthru
      _
    %286 = vsyncpa [#allocation3], 1
    %287 = vsyncpa [#allocation6], 1
    %288 = vsyncpa [#allocation4], 1

</llo_original>
